<compile_context>
chip_gen: v6e
topology: v6e:2x2x1
jax: 0.10.0
libtpu: 0.0.40
codegen_flags: <defaults>
</compile_context>

<pallas_src>
import functools
import math

import jax
import jax.numpy as jnp
from jax.experimental import pallas as pl
from jax.experimental.pallas import tpu as pltpu


def _feature_loss_kernel(mask_ref, w_ref, x_ref, y_ref, o_ref, acc_ref, *,
                         tiles_per_core, need_row_mask, valid_rows_last,
                         last_tile_global):
    c = pl.program_id(0)          # core-split axis ("parallel")
    i = pl.program_id(1)          # row-tile axis ("arbitrary", reduction)

    @pl.when(i == 0)
    def _():
        acc_ref[...] = jnp.zeros_like(acc_ref)

    x = x_ref[...].astype(jnp.float32)
    y = y_ref[...].astype(jnp.float32)
    is_cat = mask_ref[...] > 0.5                      # (1, Fd) bool, per-column

    # Continuous columns: squared error.
    diff = x - y
    sq = diff * diff
    # Categorical columns: numerically stable BCE-with-logits
    #   max(x, 0) - x*y + log(1 + exp(-|x|))
    bce = jnp.maximum(x, 0.0) - x * y + jnp.log(1.0 + jnp.exp(-jnp.abs(x)))
    # Column groups are disjoint -> one combined per-element term (lane select).
    combined = jnp.where(is_cat, bce, sq)             # (tr, Fd)

    tr, fd = combined.shape

    def accumulate(vals):
        # Sublane-group reduction (tr, Fd) -> (8, Fd): pure VPU vreg adds,
        # then accumulate into the small VMEM accumulator.
        part = jnp.sum(vals.reshape(tr // 8, 8, fd), axis=0)
        acc_ref[...] += part

    if need_row_mask:
        is_last_global = (c * tiles_per_core + i) == last_tile_global

        @pl.when(jnp.logical_not(is_last_global))
        def _():
            accumulate(combined)

        @pl.when(is_last_global)
        def _():
            # Only the globally-last tile has padded garbage rows; discard them
            # with a select (multiply-masking could propagate NaN/Inf).
            rows = jax.lax.broadcasted_iota(jnp.int32, combined.shape, 0)
            accumulate(jnp.where(rows < valid_rows_last, combined, 0.0))
    else:
        accumulate(combined)

    @pl.when(i == tiles_per_core - 1)
    def _():
        col_sums = jnp.sum(acc_ref[...], axis=0, keepdims=True)   # (1, Fd)
        o_ref[0, 0] = jnp.sum(col_sums * w_ref[...])              # scalar partial


def feature_loss(inp, target, cat_features, *, tile_rows=1024,
                 vmem_budget_bytes=24 << 20):
    """Pallas implementation of Feature_loss.forward. Returns a scalar f32.

    cat_features: static Python list of categorical column indices (derived
    from cat_columns / column_order exactly like the nn.Module).
    """
    assert inp.shape == target.shape and inp.ndim == 2
    B, F = inp.shape

    cat_set = set(int(c) for c in cat_features)
    n_cat = len(cat_set)
    n_cont = F - n_cat
    assert n_cat > 0 and n_cont > 0, "both column groups must be non-empty"

    # ---- Lane densification: view (B, F) as (B/r, r*F), r*F % 128 == 0 ------
    r0 = 128 // math.gcd(F, 128)
    r = r0 if (r0 > 1 and B % r0 == 0) else 1
    Bd, Fd = B // r, F * r
    inp_d = inp.reshape(Bd, Fd)
    tgt_d = target.reshape(Bd, Fd)

    # Per-column is-categorical mask and per-column mean weight, tiled r times
    # (column j of the dense view is original column j % F).
    is_cat_row = [1.0 if c in cat_set else 0.0 for c in range(F)]
    w_row = [(1.0 / (B * n_cat)) if c in cat_set else (1.0 / (B * n_cont))
             for c in range(F)]
    mask = jnp.asarray(is_cat_row * r, jnp.float32).reshape(1, Fd)
    weight = jnp.asarray(w_row * r, jnp.float32).reshape(1, Fd)

    # ---- VMEM-budget-driven row-tile size ------------------------------------
    dsize = jnp.dtype(inp.dtype).itemsize
    # 2 inputs x 2 pipeline buffers + ~10 f32 elementwise intermediates.
    bytes_per_row = Fd * (4 * dsize + 10 * 4)
    tr = max(8, min(int(tile_rows), int(vmem_budget_bytes // bytes_per_row)))
    tr = max(8, (tr // 8) * 8)
    b_rounded = ((Bd + 7) // 8) * 8          # keep tr a multiple of 8
    tr = min(tr, b_rounded)

    n_tiles = pl.cdiv(Bd, tr)
    # Optional 2-way core split (v7x megacore); degenerate to 1 otherwise.
    num_split = 2 if (n_tiles >= 2 and n_tiles % 2 == 0) else 1
    tiles_per_core = n_tiles // num_split

    need_row_mask = (Bd % tr) != 0
    valid_rows_last = Bd - (n_tiles - 1) * tr
    last_tile_global = n_tiles - 1

    kernel = functools.partial(
        _feature_loss_kernel,
        tiles_per_core=tiles_per_core,
        need_row_mask=need_row_mask,
        valid_rows_last=valid_rows_last,
        last_tile_global=last_tile_global,
    )

    partials = pl.pallas_call(
        kernel,
        out_shape=jax.ShapeDtypeStruct((num_split, 1), jnp.float32),
        grid_spec=pltpu.PrefetchScalarGridSpec(
            num_scalar_prefetch=0,
            grid=(num_split, tiles_per_core),
            in_specs=[
                pl.BlockSpec((1, Fd), lambda c, i: (0, 0)),    # is_cat mask
                pl.BlockSpec((1, Fd), lambda c, i: (0, 0)),    # column weights
                pl.BlockSpec((tr, Fd),
                             lambda c, i: (c * tiles_per_core + i, 0)),  # input
                pl.BlockSpec((tr, Fd),
                             lambda c, i: (c * tiles_per_core + i, 0)),  # target
            ],
            out_specs=pl.BlockSpec((1, 1), lambda c, i: (c, 0),
                                   memory_space=pltpu.SMEM),
            scratch_shapes=[pltpu.VMEM((8, Fd), jnp.float32)],
        ),
        compiler_params=pltpu.CompilerParams(
            dimension_semantics=("parallel", "arbitrary"),
            vmem_limit_bytes=48 << 20),
    )(mask, weight, inp_d, tgt_d)

    # Combine the per-core partial sums (size 1 or 2).
    return jnp.sum(partials)


def feature_loss_ref(inp, target, cat_features, cont_features):
    """Pure-JAX reference matching the PyTorch module."""
    cat_idx = jnp.asarray(cat_features)
    cont_idx = jnp.asarray(cont_features)
    xc, yc = inp[:, cont_idx], target[:, cont_idx]
    cont_loss = jnp.mean((xc - yc) ** 2)
    xk, yk = inp[:, cat_idx], target[:, cat_idx]
    cat_loss = jnp.mean(jnp.maximum(xk, 0.0) - xk * yk +
                        jnp.log(1.0 + jnp.exp(-jnp.abs(xk))))
    return cont_loss + cat_loss


if __name__ == "__main__":
    key = jax.random.PRNGKey(0)

    # Tabular demo: 24 features; every 3rd column is categorical.
    F = 24
    column_order = [f"f{i}" for i in range(F)]
    cat_columns = {f"f{i}" for i in range(0, F, 3)}
    cat_features = [i for i, name in enumerate(column_order)
                    if name in cat_columns]
    cont_features = [i for i, name in enumerate(column_order)
                     if name not in cat_columns]
    is_cat_col = jnp.zeros((F,), jnp.float32).at[jnp.asarray(cat_features)].set(1.0)

    def make_inputs(k, B):
        k1, k2, k3 = jax.random.split(k, 3)
        x = jax.random.normal(k1, (B, F), jnp.float32)           # logits / preds
        cont_t = jax.random.normal(k2, (B, F), jnp.float32)
        cat_t = (jax.random.uniform(k3, (B, F)) > 0.5).astype(jnp.float32)
        t = jnp.where(is_cat_col[None, :] > 0.5, cat_t, cont_t)
        return x, t

    # (B, tile_rows) cases exercising: dense layout + multi-step + ragged tile,
    # dense layout + 2-way core split, and the r=1 lane-sparse fallback.
    cases = [(320, 8), (512, 8), (300, 1024)]
    keys = jax.random.split(key, len(cases))
    for (B, tr), k in zip(cases, keys):
        inp, target = make_inputs(k, B)
        loss = jax.block_until_ready(
            feature_loss(inp, target, cat_features, tile_rows=tr))
        ref = feature_loss_ref(inp, target, cat_features, cont_features)
        assert jnp.allclose(loss, ref, rtol=1e-5, atol=1e-4), (B, tr, loss, ref)

    print("KERNEL_OK")
</pallas_src>

<mosaic_0001>
module attributes {stable_mosaic.version = 11 : i64} {
  func.func @_feature_loss_kernel(%arg0: i32, %arg1: i32, %arg2: memref<1x384xf32, #tpu.memory_space<vmem>>, %arg3: memref<1x384xf32, #tpu.memory_space<vmem>>, %arg4: memref<8x384xf32, #tpu.memory_space<vmem>>, %arg5: memref<8x384xf32, #tpu.memory_space<vmem>>, %arg6: memref<1x1xf32, #tpu.memory_space<smem>>, %arg7: memref<8x384xf32, #tpu.memory_space<vmem>>) attributes {dimension_semantics = [#tpu.dimension_semantics<parallel>, #tpu.dimension_semantics<arbitrary>], iteration_bounds = array<i64: 1, 3>, scalar_prefetch = 0 : i64, scratch_operands = 1 : i64, tpu.core_type = #tpu.core_type<tc>, window_params = [{pipeline_mode = #tpu.pipeline_mode<synchronous>, transform_indices = @transform_0, window_bounds = array<i64: 1, 384>}, {pipeline_mode = #tpu.pipeline_mode<synchronous>, transform_indices = @transform_1, window_bounds = array<i64: 1, 384>}, {transform_indices = @transform_2, window_bounds = array<i64: 8, 384>}, {transform_indices = @transform_3, window_bounds = array<i64: 8, 384>}, {transform_indices = @transform_4, window_bounds = array<i64: 1, 1>}]} {
    %c0_i32 = arith.constant 0 : i32
    %0 = arith.cmpi eq, %arg1, %c0_i32 : i32
    %1 = arith.extui %0 : i1 to i32
    %c0_i32_0 = arith.constant 0 : i32
    %2 = arith.cmpi ne, %1, %c0_i32_0 : i32
    scf.if %2 {
      %cst_13 = arith.constant 0.000000e+00 : f32
      %36 = vector.broadcast %cst_13 : f32 to vector<8x384xf32>
      %c0_14 = arith.constant 0 : index
      %c0_15 = arith.constant 0 : index
      %37 = vector.load %arg7[%c0_14, %c0_15] : memref<8x384xf32, #tpu.memory_space<vmem>>, vector<8x384xf32>
      tpu.vector_store %arg7[%c0_14, %c0_15], %36 {strides = array<i32>} : memref<8x384xf32, #tpu.memory_space<vmem>>, vector<8x384xf32>,
    } else {
    }
    %c0 = arith.constant 0 : index
    %c0_1 = arith.constant 0 : index
    %3 = vector.load %arg4[%c0, %c0_1] : memref<8x384xf32, #tpu.memory_space<vmem>>, vector<8x384xf32>
    %c0_2 = arith.constant 0 : index
    %c0_3 = arith.constant 0 : index
    %4 = vector.load %arg5[%c0_2, %c0_3] : memref<8x384xf32, #tpu.memory_space<vmem>>, vector<8x384xf32>
    %c0_4 = arith.constant 0 : index
    %c0_5 = arith.constant 0 : index
    %5 = vector.load %arg2[%c0_4, %c0_5] : memref<1x384xf32, #tpu.memory_space<vmem>>, vector<1x384xf32>
    %cst = arith.constant 5.000000e-01 : f32
    %6 = vector.broadcast %cst : f32 to vector<1x384xf32>
    %7 = arith.cmpf ogt, %5, %6 : vector<1x384xf32>
    %8 = arith.subf %3, %4 : vector<8x384xf32>
    %9 = arith.mulf %8, %8 : vector<8x384xf32>
    %cst_6 = arith.constant 0.000000e+00 : f32
    %10 = vector.broadcast %cst_6 : f32 to vector<8x384xf32>
    %11 = arith.maximumf %3, %10 : vector<8x384xf32>
    %12 = arith.mulf %3, %4 : vector<8x384xf32>
    %13 = arith.subf %11, %12 : vector<8x384xf32>
    %14 = math.absf %3 : vector<8x384xf32>
    %cst_7 = arith.constant 0.000000e+00 : f32
    %15 = vector.broadcast %cst_7 : f32 to vector<8x384xf32>
    %16 = arith.subf %15, %14 : vector<8x384xf32>
    %17 = math.exp %16 : vector<8x384xf32>
    %cst_8 = arith.constant 1.000000e+00 : f32
    %18 = vector.broadcast %cst_8 : f32 to vector<8x384xf32>
    %19 = arith.addf %18, %17 : vector<8x384xf32>
    %20 = math.log %19 : vector<8x384xf32>
    %21 = arith.addf %13, %20 : vector<8x384xf32>
    %22 = vector.shape_cast %7 : vector<1x384xi1> to vector<1x384xi1>
    %23 = vector.broadcast %22 : vector<1x384xi1> to vector<8x384xi1>
    %24 = arith.select %23, %21, %9 : vector<8x384xi1>, vector<8x384xf32>
    %c3_i32 = arith.constant 3 : i32
    %25 = arith.muli %arg0, %c3_i32 : i32
    %26 = arith.addi %25, %arg1 : i32
    %c2_i32 = arith.constant 2 : i32
    %27 = arith.cmpi eq, %26, %c2_i32 : i32
    %true = arith.constant true
    %28 = arith.xori %27, %true : i1
    %29 = arith.extui %28 : i1 to i32
    %c0_i32_9 = arith.constant 0 : i32
    %30 = arith.cmpi ne, %29, %c0_i32_9 : i32
    scf.if %30 {
      %36 = vector.shape_cast %24 : vector<8x384xf32> to vector<1x8x384xf32>
      %cst_13 = arith.constant dense<0.000000e+00> : vector<8x384xf32>
      %37 = vector.multi_reduction <add>, %36, %cst_13 [0] : vector<1x8x384xf32> to vector<8x384xf32>
      %c0_14 = arith.constant 0 : index
      %c0_15 = arith.constant 0 : index
      %38 = vector.load %arg7[%c0_14, %c0_15] : memref<8x384xf32, #tpu.memory_space<vmem>>, vector<8x384xf32>
      %39 = arith.addf %38, %37 : vector<8x384xf32>
      %c0_16 = arith.constant 0 : index
      %c0_17 = arith.constant 0 : index
      %40 = vector.load %arg7[%c0_16, %c0_17] : memref<8x384xf32, #tpu.memory_space<vmem>>, vector<8x384xf32>
      tpu.vector_store %arg7[%c0_16, %c0_17], %39 {strides = array<i32>} : memref<8x384xf32, #tpu.memory_space<vmem>>, vector<8x384xf32>,
    } else {
    }
    %31 = arith.extui %27 : i1 to i32
    %c0_i32_10 = arith.constant 0 : i32
    %32 = arith.cmpi ne, %31, %c0_i32_10 : i32
    scf.if %32 {
      %36 = tpu.iota {dimensions = array<i32: 0>} : vector<8x384xi32>
      %c4_i32 = arith.constant 4 : i32
      %37 = vector.broadcast %c4_i32 : i32 to vector<8x384xi32>
      %38 = arith.cmpi slt, %36, %37 : vector<8x384xi32>
      %cst_13 = arith.constant 0.000000e+00 : f32
      %39 = vector.broadcast %cst_13 : f32 to vector<8x384xf32>
      %40 = arith.select %38, %24, %39 : vector<8x384xi1>, vector<8x384xf32>
      %41 = vector.shape_cast %40 : vector<8x384xf32> to vector<1x8x384xf32>
      %cst_14 = arith.constant dense<0.000000e+00> : vector<8x384xf32>
      %42 = vector.multi_reduction <add>, %41, %cst_14 [0] : vector<1x8x384xf32> to vector<8x384xf32>
      %c0_15 = arith.constant 0 : index
      %c0_16 = arith.constant 0 : index
      %43 = vector.load %arg7[%c0_15, %c0_16] : memref<8x384xf32, #tpu.memory_space<vmem>>, vector<8x384xf32>
      %44 = arith.addf %43, %42 : vector<8x384xf32>
      %c0_17 = arith.constant 0 : index
      %c0_18 = arith.constant 0 : index
      %45 = vector.load %arg7[%c0_17, %c0_18] : memref<8x384xf32, #tpu.memory_space<vmem>>, vector<8x384xf32>
      tpu.vector_store %arg7[%c0_17, %c0_18], %44 {strides = array<i32>} : memref<8x384xf32, #tpu.memory_space<vmem>>, vector<8x384xf32>,
    } else {
    }
    %c2_i32_11 = arith.constant 2 : i32
    %33 = arith.cmpi eq, %arg1, %c2_i32_11 : i32
    %34 = arith.extui %33 : i1 to i32
    %c0_i32_12 = arith.constant 0 : i32
    %35 = arith.cmpi ne, %34, %c0_i32_12 : i32
    scf.if %35 {
      %c0_13 = arith.constant 0 : index
      %c0_14 = arith.constant 0 : index
      %36 = vector.load %arg7[%c0_13, %c0_14] : memref<8x384xf32, #tpu.memory_space<vmem>>, vector<8x384xf32>
      %cst_15 = arith.constant dense<0.000000e+00> : vector<384xf32>
      %37 = vector.multi_reduction <add>, %36, %cst_15 [0] : vector<8x384xf32> to vector<384xf32>
      %38 = vector.shape_cast %37 : vector<384xf32> to vector<1x384xf32>
      %c0_16 = arith.constant 0 : index
      %c0_17 = arith.constant 0 : index
      %39 = vector.load %arg3[%c0_16, %c0_17] : memref<1x384xf32, #tpu.memory_space<vmem>>, vector<1x384xf32>
      %40 = arith.mulf %38, %39 : vector<1x384xf32>
      %41 = vector.shape_cast %40 : vector<1x384xf32> to vector<1x1x384xf32>
      %cst_18 = arith.constant dense<0.000000e+00> : vector<1xf32>
      %42 = vector.multi_reduction <add>, %41, %cst_18 [1, 2] : vector<1x1x384xf32> to vector<1xf32>
      %43 = vector.shape_cast %42 : vector<1xf32> to vector<1x1x1xf32>
      %44 = vector.extract %43[0, 0, 0] : f32 from vector<1x1x1xf32>
      %c0_19 = arith.constant 0 : index
      %c0_20 = arith.constant 0 : index
      %45 = memref.load %arg6[%c0_19, %c0_20] : memref<1x1xf32, #tpu.memory_space<smem>>
      memref.store %44, %arg6[%c0_19, %c0_20] : memref<1x1xf32, #tpu.memory_space<smem>>
    } else {
    }
    return
  }
  func.func @transform_0(%arg0: i32, %arg1: i32) -> (i32, i32) {
    %c0_i32 = arith.constant 0 : i32
    %c0_i32_0 = arith.constant 0 : i32
    %c0_i32_1 = arith.constant 0 : i32
    return %c0_i32, %c0_i32_0 : i32, i32
  }
  func.func @transform_1(%arg0: i32, %arg1: i32) -> (i32, i32) {
    %c0_i32 = arith.constant 0 : i32
    %c0_i32_0 = arith.constant 0 : i32
    %c0_i32_1 = arith.constant 0 : i32
    return %c0_i32, %c0_i32_0 : i32, i32
  }
  func.func @transform_2(%arg0: i32, %arg1: i32) -> (i32, i32) {
    %c3_i32 = arith.constant 3 : i32
    %0 = arith.muli %arg0, %c3_i32 : i32
    %1 = arith.addi %0, %arg1 : i32
    %c0_i32 = arith.constant 0 : i32
    %c0_i32_0 = arith.constant 0 : i32
    return %1, %c0_i32 : i32, i32
  }
  func.func @transform_3(%arg0: i32, %arg1: i32) -> (i32, i32) {
    %c3_i32 = arith.constant 3 : i32
    %0 = arith.muli %arg0, %c3_i32 : i32
    %1 = arith.addi %0, %arg1 : i32
    %c0_i32 = arith.constant 0 : i32
    %c0_i32_0 = arith.constant 0 : i32
    return %1, %c0_i32 : i32, i32
  }
  func.func @transform_4(%arg0: i32, %arg1: i32) -> (i32, i32) {
    %c0_i32 = arith.constant 0 : i32
    %c0_i32_0 = arith.constant 0 : i32
    return %arg0, %c0_i32 : i32, i32
  }
}

</mosaic_0001>

<llo_original>
// kernel: tpu_custom_call.1
$region0: #{tpu_custom_call.1}
  #allocation0 [shape = 'u32[]', space=smem, size = 0x4, offset = 0x4, fixed_abs, tag = 'smem constant byte address 0x4 - core index']
  #allocation1 [shape = 'u32[144,128]{1,0:T(1,128)}', space=vmem, size = 0x12000, scoped, tag = 'internal scratch']
  #allocation2 [shape = 'f32[8,384]{1,0:T(8,128)}', space=vmem, size = 0x3000, scoped, tag = 'scratch operand']
  %s0 = inlined_call_operand.hbm [shape: f32[1,384], index: 0, kind: input, shape index: {}]
  %s1 = inlined_call_operand.hbm [shape: f32[1,384], index: 1, kind: input, shape index: {}]
  %s2 = inlined_call_operand.hbm [shape: f32[20,384], index: 2, kind: input, shape index: {}]
  %s3 = inlined_call_operand.hbm [shape: f32[20,384], index: 3, kind: input, shape index: {}]
  %s4 = inlined_call_operand.hbm [shape: f32[1,1], index: 4, kind: output, shape index: {}]
  %s5 = sld [smem:[#allocation0]]
  $region81: #{tpu_custom_call.1} parent=0
    _
  %s7 = ssub.s32 1, %s5
  %s8 = scalar_select 0, %s7, %s5
  $region1: #{tpu_custom_call.1} parent=0
    #allocation3 [shape = 'u8[1536]{0}', space=vmem, size = 0x800, scoped, tag = 'input window, operand 0, single buffered']
    #allocation4 [shape = 's32[2]{0}', space=sflag, size = 0x8, scoped, tag = 'scoped memory for tpu_custom_call.1']
    #allocation5 [shape = 's32[2]{0}', space=sflag, size = 0x8, scoped, tag = 'scoped memory for tpu_custom_call.1']
    #allocation6 [shape = 'u8[1536]{0}', space=vmem, size = 0x800, scoped, tag = 'input window, operand 1, single buffered']
    #allocation7 [shape = 's32[1]{0}', space=sflag, size = 0x4, scoped, tag = 'scoped memory for tpu_custom_call.1']
    #allocation8 [shape = 'u8[24576]{0}', space=vmem, size = 0x6000, scoped, tag = 'input window, operand 2']
    #allocation9 [shape = 'u8[24576]{0}', space=vmem, size = 0x6000, scoped, tag = 'input window, operand 3']
    #allocation10 [shape = 'u8[512]{0}', space=smem, size = 0x200, scoped, tag = 'output window, operand 0, single buffered']
    %9 = vsyncpa [#allocation4], 0
    %10 = vsyncpa [#allocation7], 0
    %11 = vsyncpa [#allocation5], 0
    loop: start=0, step=1, limit=5
    $region2: #{tpu_custom_call.1} parent=1 // loop_pre_header
      _
    $region3: #{tpu_custom_call.1} parent=1 // loop_header
      %s13 = sphi 0, %s17
      %p14 = scmp.ge.s32.totalorder %s13, 5
      %s20 = sphi 0, %s32
      %s21 = sphi 0, %s28
      %s22 = sphi 0, %s20
      %s23 = sphi 0, %s21
      %s24 = sphi 0, %s22
      %s25 = sphi 0, %s23
      %s33 = sphi 0, %s33
      %s35 = sphi 0, %s33
      %s36 = sphi 0, %s35
      %s50 = sphi 0, %s36
      %s54 = sphi 0, %s54
      %s56 = sphi 0, %s54
      %s57 = sphi 0, %s56
      %s71 = sphi 0, %s57
      %s81 = sphi 0, %s83
      %s84 = sphi 0, %s81
      %s85 = sphi 0, %s84
      %s101 = sphi 0, %s85
      %s111 = sphi 0, %s113
      %s114 = sphi 0, %s111
      %s115 = sphi 0, %s114
      %s131 = sphi 0, %s115
      %s137 = sphi 0, %s139
      %s140 = sphi 0, %s137
      %s141 = sphi 0, %s140
      %s157 = sphi 0, %s141
    $region4: #{tpu_custom_call.1} parent=1 // loop_header_branch
      %16 = sbr.rel (%p14) target = $region8
    $region5: #{tpu_custom_call.1} parent=1 // loop_body
      %s18 = ssub.s32 %s13, 1
      %s19 = ssub.s32 %s13, 2
      %s26 = sadd.s32 1, %s21
      %p27 = scmp.ge.s32.totalorder %s26, 3
      %s28 = scalar_select %p27, 0, %s26
      %s29 = sadd.s32 1, %s20
      %s30 = scalar_select %p27, %s29, %s20
      %p31 = scmp.ge.s32.totalorder %s30, 1
      %s32 = scalar_select %p31, 0, %s30
      %s34 = sadd.s32 %s33, 1
      %p37 = scmp.eq.s32.totalorder %s13, 2
      %p38 = scmp.ne.s32.totalorder %s33, %s35
      %p39 = scmp.eq.s32.totalorder %s13, 0
      %p40 = por %p38, %p39
      %p41 = scmp.ne.s32.totalorder %s33, %s35
      %p42 = scmp.eq.s32.totalorder %s18, 2
      %p43 = por %p41, %p42
      %p44 = scmp.ne.s32.totalorder %s35, %s36
      %p45 = scmp.eq.s32.totalorder %s18, 0
      %p46 = por %p44, %p45
      %p47 = scmp.ne.s32.totalorder %s35, %s36
      %p48 = scmp.eq.s32.totalorder %s19, 2
      %p49 = por %p47, %p48
      %p51 = scmp.ne.s32.totalorder %s36, %s50
      %p52 = scmp.eq.s32.totalorder %s19, 0
      %p53 = por %p51, %p52
      %s55 = sadd.s32 %s54, 1
      %p58 = scmp.eq.s32.totalorder %s13, 2
      %p59 = scmp.ne.s32.totalorder %s54, %s56
      %p60 = scmp.eq.s32.totalorder %s13, 0
      %p61 = por %p59, %p60
      %p62 = scmp.ne.s32.totalorder %s54, %s56
      %p63 = scmp.eq.s32.totalorder %s18, 2
      %p64 = por %p62, %p63
      %p65 = scmp.ne.s32.totalorder %s56, %s57
      %p66 = scmp.eq.s32.totalorder %s18, 0
      %p67 = por %p65, %p66
      %p68 = scmp.ne.s32.totalorder %s56, %s57
      %p69 = scmp.eq.s32.totalorder %s19, 2
      %p70 = por %p68, %p69
      %p72 = scmp.ne.s32.totalorder %s57, %s71
      %p73 = scmp.eq.s32.totalorder %s19, 0
      %p74 = por %p72, %p73
      %s75 = smul.u32 %s20, 3
      %s76 = sadd.s32 %s75, %s21
      %s77 = smul.u32 %s32, 3
      %s78 = sadd.s32 %s77, %s28
      %s79 = ssub.s32 %s76, %s78
      %p80 = scmp.eq.s32.totalorder %s79, 0
      %s82 = sadd.s32 %s81, 1
      %s83 = scalar_select %p80, %s81, %s82
      %p86 = pneg %p80
      %p87 = scmp.eq.s32.totalorder %s13, 2
      %p88 = por %p86, %p87
      %p89 = scmp.ne.s32.totalorder %s81, %s84
      %p90 = scmp.eq.s32.totalorder %s13, 0
      %p91 = por %p89, %p90
      %p92 = scmp.ne.s32.totalorder %s81, %s84
      %p93 = scmp.eq.s32.totalorder %s18, 2
      %p94 = por %p92, %p93
      %p95 = scmp.ne.s32.totalorder %s84, %s85
      %p96 = scmp.eq.s32.totalorder %s18, 0
      %p97 = por %p95, %p96
      %p98 = scmp.ne.s32.totalorder %s84, %s85
      %p99 = scmp.eq.s32.totalorder %s19, 2
      %p100 = por %p98, %p99
      %p102 = scmp.ne.s32.totalorder %s85, %s101
      %p103 = scmp.eq.s32.totalorder %s19, 0
      %p104 = por %p102, %p103
      %s105 = smul.u32 %s20, 3
      %s106 = sadd.s32 %s105, %s21
      %s107 = smul.u32 %s32, 3
      %s108 = sadd.s32 %s107, %s28
      %s109 = ssub.s32 %s106, %s108
      %p110 = scmp.eq.s32.totalorder %s109, 0
      %s112 = sadd.s32 %s111, 1
      %s113 = scalar_select %p110, %s111, %s112
      %p116 = pneg %p110
      %p117 = scmp.eq.s32.totalorder %s13, 2
      %p118 = por %p116, %p117
      %p119 = scmp.ne.s32.totalorder %s111, %s114
      %p120 = scmp.eq.s32.totalorder %s13, 0
      %p121 = por %p119, %p120
      %p122 = scmp.ne.s32.totalorder %s111, %s114
      %p123 = scmp.eq.s32.totalorder %s18, 2
      %p124 = por %p122, %p123
      %p125 = scmp.ne.s32.totalorder %s114, %s115
      %p126 = scmp.eq.s32.totalorder %s18, 0
      %p127 = por %p125, %p126
      %p128 = scmp.ne.s32.totalorder %s114, %s115
      %p129 = scmp.eq.s32.totalorder %s19, 2
      %p130 = por %p128, %p129
      %p132 = scmp.ne.s32.totalorder %s115, %s131
      %p133 = scmp.eq.s32.totalorder %s19, 0
      %p134 = por %p132, %p133
      %s135 = ssub.s32 %s20, %s32
      %p136 = scmp.eq.s32.totalorder %s135, 0
      %s138 = sadd.s32 %s137, 1
      %s139 = scalar_select %p136, %s137, %s138
      %p142 = pneg %p136
      %p143 = scmp.eq.s32.totalorder %s13, 2
      %p144 = por %p142, %p143
      %p145 = scmp.ne.s32.totalorder %s137, %s140
      %p146 = scmp.eq.s32.totalorder %s13, 0
      %p147 = por %p145, %p146
      %p148 = scmp.ne.s32.totalorder %s137, %s140
      %p149 = scmp.eq.s32.totalorder %s18, 2
      %p150 = por %p148, %p149
      %p151 = scmp.ne.s32.totalorder %s140, %s141
      %p152 = scmp.eq.s32.totalorder %s18, 0
      %p153 = por %p151, %p152
      %p154 = scmp.ne.s32.totalorder %s140, %s141
      %p155 = scmp.eq.s32.totalorder %s19, 2
      %p156 = por %p154, %p155
      %p158 = scmp.ne.s32.totalorder %s141, %s157
      %p159 = scmp.eq.s32.totalorder %s19, 0
      %p160 = por %p158, %p159
      %p161 = scmp.le.s32.totalorder 1, %s13
      %p162 = scmp.lt.s32.totalorder %s13, 4
      %p163 = pnand %p161, %p162
      %p164 = pneg %p163
      // Predicated region
      $region9: #{tpu_custom_call.1} parent=5 // pred_check
        _
      $region10: #{tpu_custom_call.1} parent=5 // pred_check_branch
        %166 = sbr.rel (%p163) target = $region12
      $region11: #{tpu_custom_call.1} parent=5 // pred_region
        %s167 = ssub.s32 %s13, 1
        // Predicated region
        $region13: #{tpu_custom_call.1} parent=11 // pred_check
          %p168 = pneg %p46
        $region14: #{tpu_custom_call.1} parent=11 // pred_check_branch
          %170 = sbr.rel (%p168) target = $region16
        $region15: #{tpu_custom_call.1} parent=11 // pred_region
          %s172 = ssub.s32 48, 48
          %173 = vsyncadd [#allocation4], %s172
          %s175 = sshll.u32 [#allocation3], 4
          %s176 = int_to_ptr.vmem [resolvable:$true] %s175
          %178 = dma.hbm_to_vmem [thread:$0]  %s0, 48, %s176, [#allocation4]
        $region16: #{tpu_custom_call.1} parent=11 // pred_fallthru
          _
        // Predicated region
        $region17: #{tpu_custom_call.1} parent=11 // pred_check
          %p179 = pneg %p67
        $region18: #{tpu_custom_call.1} parent=11 // pred_check_branch
          %181 = sbr.rel (%p179) target = $region20
        $region19: #{tpu_custom_call.1} parent=11 // pred_region
          %s183 = ssub.s32 48, 48
          %184 = vsyncadd [#allocation7], %s183
          %s186 = sshll.u32 [#allocation6], 4
          %s187 = int_to_ptr.vmem [resolvable:$true] %s186
          %189 = dma.hbm_to_vmem [thread:$0]  %s1, 48, %s187, [#allocation7]
        $region20: #{tpu_custom_call.1} parent=11 // pred_fallthru
          _
      $region12: #{tpu_custom_call.1} parent=5 // pred_fallthru
        _
      %p190 = scmp.lt.s32.totalorder %s13, 3
      // Predicated region
      $region21: #{tpu_custom_call.1} parent=5 // pred_check
        %p191 = pneg %p190
      $region22: #{tpu_custom_call.1} parent=5 // pred_check_branch
        %193 = sbr.rel (%p191) target = $region24
      $region23: #{tpu_custom_call.1} parent=5 // pred_region
        // Predicated region
        $region25: #{tpu_custom_call.1} parent=23 // pred_check
          %p194 = pneg %p91
        $region26: #{tpu_custom_call.1} parent=23 // pred_check_branch
          %196 = sbr.rel (%p194) target = $region28
        $region27: #{tpu_custom_call.1} parent=23 // pred_region
          %s197 = sand.u32 %s13, 1
          %s198 = scalar_lea.sflag [#allocation4], %s197
          %s199 = sand.u32 %s81, 1
          %s200 = smul.addr %s199, 24
          %s201 = scalar_lea.vmem [#allocation8], %s200
          %s202 = smul.u32 %s20, 3
          %s203 = sadd.s32 %s202, %s21
          %s205 = ssub.s32 384, 384
          %206 = vsyncadd %s198, %s205
          %s207 = smul.addr %s203, 3
          %s208 = smul.addr %s207, 128
          %s209 = scalar_lea.hbm %s2, %s208
          %s211 = sshll.u32 %s201, 4
          %s212 = int_to_ptr.vmem [resolvable:$true] %s211
          %214 = dma.hbm_to_vmem [thread:$0]  %s209, 384, %s212, %s198
        $region28: #{tpu_custom_call.1} parent=23 // pred_fallthru
          _
        // Predicated region
        $region29: #{tpu_custom_call.1} parent=23 // pred_check
          %p215 = pneg %p121
        $region30: #{tpu_custom_call.1} parent=23 // pred_check_branch
          %217 = sbr.rel (%p215) target = $region32
        $region31: #{tpu_custom_call.1} parent=23 // pred_region
          %s218 = sand.u32 %s13, 1
          %s219 = scalar_lea.sflag [#allocation4], %s218
          %s220 = sand.u32 %s111, 1
          %s221 = smul.addr %s220, 24
          %s222 = scalar_lea.vmem [#allocation9], %s221
          %s223 = smul.u32 %s20, 3
          %s224 = sadd.s32 %s223, %s21
          %s226 = ssub.s32 384, 384
          %227 = vsyncadd %s219, %s226
          %s228 = smul.addr %s224, 3
          %s229 = smul.addr %s228, 128
          %s230 = scalar_lea.hbm %s3, %s229
          %s232 = sshll.u32 %s222, 4
          %s233 = int_to_ptr.vmem [resolvable:$true] %s232
          %235 = dma.hbm_to_vmem [thread:$0]  %s230, 384, %s233, %s219
        $region32: #{tpu_custom_call.1} parent=23 // pred_fallthru
          _
      $region24: #{tpu_custom_call.1} parent=5 // pred_fallthru
        _
      %p236 = scmp.le.s32.totalorder 1, %s13
      %p237 = scmp.lt.s32.totalorder %s13, 4
      %p238 = pnand %p236, %p237
      %p239 = pneg %p238
      // Predicated region
      $region33: #{tpu_custom_call.1} parent=5 // pred_check
        _
      $region34: #{tpu_custom_call.1} parent=5 // pred_check_branch
        %241 = sbr.rel (%p238) target = $region36
      $region35: #{tpu_custom_call.1} parent=5 // pred_region
        %s242 = ssub.s32 %s13, 1
        // Predicated region
        $region37: #{tpu_custom_call.1} parent=35 // pred_check
          %p243 = pneg %p46
        $region38: #{tpu_custom_call.1} parent=35 // pred_check_branch
          %245 = sbr.rel (%p243) target = $region40
        $region39: #{tpu_custom_call.1} parent=35 // pred_region
          %246 = dma.done [#allocation4], 48
        $region40: #{tpu_custom_call.1} parent=35 // pred_fallthru
          _
        // Predicated region
        $region41: #{tpu_custom_call.1} parent=35 // pred_check
          %p247 = pneg %p67
        $region42: #{tpu_custom_call.1} parent=35 // pred_check_branch
          %249 = sbr.rel (%p247) target = $region44
        $region43: #{tpu_custom_call.1} parent=35 // pred_region
          %250 = dma.done [#allocation7], 48
        $region44: #{tpu_custom_call.1} parent=35 // pred_fallthru
          _
        %s251 = sand.u32 %s18, 1
        %s252 = scalar_lea.sflag [#allocation4], %s251
        %s253 = sand.u32 %s84, 1
        %s254 = smul.addr %s253, 24
        %s255 = scalar_lea.vmem [#allocation8], %s254
        // Predicated region
        $region45: #{tpu_custom_call.1} parent=35 // pred_check
          %p256 = pneg %p97
        $region46: #{tpu_custom_call.1} parent=35 // pred_check_branch
          %258 = sbr.rel (%p256) target = $region48
        $region47: #{tpu_custom_call.1} parent=35 // pred_region
          %259 = dma.done %s252, 384
        $region48: #{tpu_custom_call.1} parent=35 // pred_fallthru
          _
        %s260 = sand.u32 %s18, 1
        %s261 = scalar_lea.sflag [#allocation4], %s260
        %s262 = sand.u32 %s114, 1
        %s263 = smul.addr %s262, 24
        %s264 = scalar_lea.vmem [#allocation9], %s263
        // Predicated region
        $region49: #{tpu_custom_call.1} parent=35 // pred_check
          %p265 = pneg %p127
        $region50: #{tpu_custom_call.1} parent=35 // pred_check_branch
          %267 = sbr.rel (%p265) target = $region52
        $region51: #{tpu_custom_call.1} parent=35 // pred_region
          %268 = dma.done %s261, 384
        $region52: #{tpu_custom_call.1} parent=35 // pred_fallthru
          _
        %p269 = pneg %p46
        %p270 = pneg %p43
        %p271 = pneg %p67
        %p272 = pneg %p64
        %s273 = sand.u32 %s18, 1
        %s274 = scalar_lea.sflag [#allocation4], %s273
        %s275 = sand.u32 %s84, 1
        %s276 = smul.addr %s275, 24
        %s277 = scalar_lea.vmem [#allocation8], %s276
        %p278 = pneg %p97
        %p279 = pneg %p94
        %s280 = sand.u32 %s18, 1
        %s281 = scalar_lea.sflag [#allocation4], %s280
        %s282 = sand.u32 %s114, 1
        %s283 = smul.addr %s282, 24
        %s284 = scalar_lea.vmem [#allocation9], %s283
        %p285 = pneg %p127
        %p286 = pneg %p124
        %p287 = pneg %p153
        %p288 = pneg %p150
        %s289 = smul.u32 %s22, 3
        %s290 = sadd.s32 %s289, %s23
        %s291 = smul.u32 %s22, 3
        %s292 = sadd.s32 %s291, %s23
        %p293 = scmp.eq.s32.totalorder %s23, 0
        // Predicated region
        $region53: #{tpu_custom_call.1} parent=35 // pred_check
          %p294 = pneg %p293
        $region54: #{tpu_custom_call.1} parent=35 // pred_check_branch
          %296 = sbr.rel (%p294) target = $region56
        $region55: #{tpu_custom_call.1} parent=35 // pred_region
          %297 = vst [vmem:[#allocation2] sm:$0xff] 0.0
          %298 = vst [vmem:[#allocation2 + $0x8] sm:$0xff] 0.0
          %299 = vst [vmem:[#allocation2 + $0x10] sm:$0xff] 0.0
        $region56: #{tpu_custom_call.1} parent=35 // pred_fallthru
          _
        %v300 = vld [vmem:[%s255] sm:$0xff]
        %v301 = vld [vmem:[%s255 + $0x8] sm:$0xff]
        %v302 = vld [vmem:[%s255 + $0x10] sm:$0xff]
        %v303 = vld [vmem:[%s264] sm:$0xff]
        %v304 = vld [vmem:[%s264 + $0x8] sm:$0xff]
        %v305 = vld [vmem:[%s264 + $0x10] sm:$0xff]
        %v306 = vld [vmem:[#allocation3] sm:$0x7]
        %vm307 = vcmp.gt.f32.partialorder %v306, 0.5
        %v308 = vsub.f32 %v300, %v303
        %v309 = vsub.f32 %v301, %v304
        %v310 = vsub.f32 %v302, %v305
        %v311 = vmul.f32 %v308, %v308
        %v312 = vmul.f32 %v309, %v309
        %v313 = vmul.f32 %v310, %v310
        %v314 = vmax.f32 %v300, 0.0
        %v315 = vmax.f32 %v301, 0.0
        %v316 = vmax.f32 %v302, 0.0
        %v317 = vmul.f32 %v300, %v303
        %v318 = vmul.f32 %v301, %v304
        %v319 = vmul.f32 %v302, %v305
        %v320 = vsub.f32 %v314, %v317
        %v321 = vsub.f32 %v315, %v318
        %v322 = vsub.f32 %v316, %v319
        %v323 = vand.u32 2147483647, %v300
        %v324 = vand.u32 2147483647, %v301
        %v325 = vand.u32 2147483647, %v302
        %v326 = vsub.f32 0.0, %v323
        %v327 = vsub.f32 0.0, %v324
        %v328 = vsub.f32 0.0, %v325
        %v329 = vmul.f32 %v326, 1.442695
        %v330 = vpow.pop %v329
        %v331 = vmul.f32 %v327, 1.442695
        %v332 = vpow.pop %v331
        %v333 = vmul.f32 %v328, 1.442695
        %v334 = vpow.pop %v333
        %v335 = vadd.f32 %v330, 1.0
        %v336 = vadd.f32 %v332, 1.0
        %v337 = vadd.f32 %v334, 1.0
        %v338 = vlog2.pop %v335
        %v339 = vmul.f32 %v338, 0.6931472
        %v340 = vlog2.pop %v336
        %v341 = vmul.f32 %v340, 0.6931472
        %v342 = vlog2.pop %v337
        %v343 = vmul.f32 %v342, 0.6931472
        %v344 = vadd.f32 %v320, %v339
        %v345 = vadd.f32 %v321, %v341
        %v346 = vadd.f32 %v322, %v343
        %v347 = vsel %vm307, 1, 0
        %v348 = vlaneseq
        %v349 = vshrl.u32 %v348, 7
        %v350 = vsub.s32 0, %v349
        %v351 = vrot.slane %v347, %v350
        %v352 = vlaneseq
        %v353 = vshrl.u32 %v352, 7
        %v354 = vsub.s32 1, %v353
        %v355 = vrot.slane %v347, %v354
        %v356 = vlaneseq
        %v357 = vshrl.u32 %v356, 7
        %v358 = vsub.s32 2, %v357
        %v359 = vrot.slane %v347, %v358
        %vm360 = vcmp.eq.s32.totalorder %v351, 1
        %vm361 = vcmp.eq.s32.totalorder %v355, 1
        %vm362 = vcmp.eq.s32.totalorder %v359, 1
        %v363 = vsel %vm360, %v344, %v311
        %v364 = vsel %vm361, %v345, %v312
        %v365 = vsel %vm362, %v346, %v313
        %s366 = smul.u32 %s22, 3
        %s367 = sadd.s32 %s366, %s23
        %p368 = scmp.eq.s32.totalorder %s367, 2
        %p369 = scmp.ne.s32.totalorder %s367, 2
        // Predicated region
        $region57: #{tpu_custom_call.1} parent=35 // pred_check
          %p370 = pneg %p369
        $region58: #{tpu_custom_call.1} parent=35 // pred_check_branch
          %372 = sbr.rel (%p370) target = $region60
        $region59: #{tpu_custom_call.1} parent=35 // pred_region
          %v373 = vadd.f32 %v363, 0.0
          %v374 = vadd.f32 %v364, 0.0
          %v375 = vadd.f32 %v365, 0.0
          %v376 = vld [vmem:[#allocation2] sm:$0xff]
          %v377 = vld [vmem:[#allocation2 + $0x8] sm:$0xff]
          %v378 = vld [vmem:[#allocation2 + $0x10] sm:$0xff]
          %v379 = vadd.f32 %v376, %v373
          %v380 = vadd.f32 %v377, %v374
          %v381 = vadd.f32 %v378, %v375
          %382 = vst [vmem:[#allocation2] sm:$0xff] %v379
          %383 = vst [vmem:[#allocation2 + $0x8] sm:$0xff] %v380
          %384 = vst [vmem:[#allocation2 + $0x10] sm:$0xff] %v381
        $region60: #{tpu_custom_call.1} parent=35 // pred_fallthru
          _
        // Predicated region
        $region61: #{tpu_custom_call.1} parent=35 // pred_check
          %p385 = pneg %p368
        $region62: #{tpu_custom_call.1} parent=35 // pred_check_branch
          %387 = sbr.rel (%p385) target = $region64
        $region63: #{tpu_custom_call.1} parent=35 // pred_region
          %v388 = vlaneseq
          %v389 = vshrl.u32 %v388, 7
          %vm390 = vcmp.lt.s32.totalorder %v389, 4
          %v391 = vsel %vm390, %v363, 0.0
          %v392 = vsel %vm390, %v364, 0.0
          %v393 = vsel %vm390, %v365, 0.0
          %v394 = vadd.f32 %v391, 0.0
          %v395 = vadd.f32 %v392, 0.0
          %v396 = vadd.f32 %v393, 0.0
          %v397 = vld [vmem:[#allocation2] sm:$0xff]
          %v398 = vld [vmem:[#allocation2 + $0x8] sm:$0xff]
          %v399 = vld [vmem:[#allocation2 + $0x10] sm:$0xff]
          %v400 = vadd.f32 %v397, %v394
          %v401 = vadd.f32 %v398, %v395
          %v402 = vadd.f32 %v399, %v396
          %403 = vst [vmem:[#allocation2] sm:$0xff] %v400
          %404 = vst [vmem:[#allocation2 + $0x8] sm:$0xff] %v401
          %405 = vst [vmem:[#allocation2 + $0x10] sm:$0xff] %v402
        $region64: #{tpu_custom_call.1} parent=35 // pred_fallthru
          _
        %p406 = scmp.eq.s32.totalorder %s23, 2
        // Predicated region
        $region65: #{tpu_custom_call.1} parent=35 // pred_check
          %p407 = pneg %p406
        $region66: #{tpu_custom_call.1} parent=35 // pred_check_branch
          %409 = sbr.rel (%p407) target = $region68
        $region67: #{tpu_custom_call.1} parent=35 // pred_region
          %v410 = vld [vmem:[#allocation2] sm:$0xff]
          %v411 = vld [vmem:[#allocation2 + $0x8] sm:$0xff]
          %v412 = vld [vmem:[#allocation2 + $0x10] sm:$0xff]
          %v413 = vrot.slane %v410, 4
          %v414 = vadd.f32 %v410, %v413
          %v415 = vrot.slane %v414, 2
          %v416 = vadd.f32 %v414, %v415
          %v417 = vrot.slane %v416, 1
          %v418 = vadd.f32 %v416, %v417
          %v419 = vrot.slane %v411, 4
          %v420 = vadd.f32 %v411, %v419
          %v421 = vrot.slane %v420, 2
          %v422 = vadd.f32 %v420, %v421
          %v423 = vrot.slane %v422, 1
          %v424 = vadd.f32 %v422, %v423
          %v425 = vrot.slane %v412, 4
          %v426 = vadd.f32 %v412, %v425
          %v427 = vrot.slane %v426, 2
          %v428 = vadd.f32 %v426, %v427
          %v429 = vrot.slane %v428, 1
          %v430 = vadd.f32 %v428, %v429
          %v431 = vld [vmem:[#allocation6] sm:$0x7]
          %v433 = vlaneseq
          %v434 = vshrl.u32 %v433, 7
          %v435 = vsub.s32 0, %v434
          %v436 = vrot.slane %v431, %v435
          %v437 = vlaneseq
          %v438 = vshrl.u32 %v437, 7
          %v439 = vsub.s32 1, %v438
          %v440 = vrot.slane %v431, %v439
          %v441 = vlaneseq
          %v442 = vshrl.u32 %v441, 7
          %v443 = vsub.s32 2, %v442
          %v444 = vrot.slane %v431, %v443
          %v448 = vmul.f32 %v418, %v436
          %v449 = vmul.f32 %v424, %v440
          %v450 = vmul.f32 %v430, %v444
          %vm451 = vcmask 1040384
          %v452 = vsel %vm451, %v448, 0.0
          %v453 = vsel %vm451, %v449, 0.0
          %v454 = vadd.f32 %v452, %v453
          %v455 = vsel %vm451, %v450, 0.0
          %v456 = vadd.f32 %v454, %v455
          %457 = vadd.xlane.f32.xlu0 %v456
          %v458 = vpop.xlane.xlu0 %457
          %v459 = vrot.slane %v458, 4
          %v460 = vadd.f32 %v458, %v459
          %v461 = vrot.slane %v460, 2
          %v462 = vadd.f32 %v460, %v461
          %v463 = vrot.slane %v462, 1
          %v464 = vadd.f32 %v462, %v463
          %s465 = vtos %v464
          %s466 = scalar_lea.smem [#allocation10], 0
          %467 = sst [smem:[%s466]] %s465
        $region68: #{tpu_custom_call.1} parent=35 // pred_fallthru
          _
        // Predicated region
        $region69: #{tpu_custom_call.1} parent=35 // pred_check
          %p468 = pneg %p150
        $region70: #{tpu_custom_call.1} parent=35 // pred_check_branch
          %470 = sbr.rel (%p468) target = $region72
        $region71: #{tpu_custom_call.1} parent=35 // pred_region
          %s472 = ssub.s32 16, 16
          %473 = vsyncadd [#allocation5], %s472
          %s474 = smul.addr %s22, 16
          %s475 = scalar_lea.hbm %s4, %s474
          %478 = dma.smem_to_hbm [#allocation10], 16, %s475, [#allocation5]
        $region72: #{tpu_custom_call.1} parent=35 // pred_fallthru
          _
        // Predicated region
        $region73: #{tpu_custom_call.1} parent=35 // pred_check
          %p479 = pneg %p150
        $region74: #{tpu_custom_call.1} parent=35 // pred_check_branch
          %481 = sbr.rel (%p479) target = $region76
        $region75: #{tpu_custom_call.1} parent=35 // pred_region
          %482 = dma.done [#allocation5], 16
        $region76: #{tpu_custom_call.1} parent=35 // pred_fallthru
          _
        %483 = sfence
      $region36: #{tpu_custom_call.1} parent=5 // pred_fallthru
        _
      %p484 = scmp.le.s32.totalorder 2, %s13
      // Predicated region
      $region77: #{tpu_custom_call.1} parent=5 // pred_check
        %p485 = pneg %p484
      $region78: #{tpu_custom_call.1} parent=5 // pred_check_branch
        %487 = sbr.rel (%p485) target = $region80
      $region79: #{tpu_custom_call.1} parent=5 // pred_region
        %s488 = ssub.s32 %s13, 2
      $region80: #{tpu_custom_call.1} parent=5 // pred_fallthru
        _
    $region6: #{tpu_custom_call.1} parent=1 // loop_footer
      %s17 = sadd.s32 1, %s13
    $region7: #{tpu_custom_call.1} parent=1 // loop_footer_branch
      %12 = sbr.rel target = $region3
    $region8: #{tpu_custom_call.1} parent=1 // loop_exit
      _
    %489 = vsyncpa [#allocation4], 1
    %s490 = scalar_lea.sflag [#allocation4], 1
    %491 = vsyncpa %s490, 1
    %492 = vsyncpa [#allocation7], 1
    %493 = vsyncpa [#allocation5], 1
    %s494 = scalar_lea.sflag [#allocation5], 1
    %495 = vsyncpa %s494, 1

</llo_original>
